<compile_context>
chip_gen: v7x
topology: tpu7x:2x2x1
jax: 0.10.0
libtpu: 0.0.40
codegen_flags: <defaults>
</compile_context>

<pallas_src>
import functools

import jax
import jax.numpy as jnp
from jax.experimental import pallas as pl
from jax.experimental.pallas import tpu as pltpu


_TARGET_STEP_BYTES = 2 << 20      # aim for ~1-2 MB of x+out traffic per grid step
_FUSED_MAX_STEP_BYTES = 8 << 20   # above this (per batch element) we tile HW instead


# ----------------------------------------------------------------------------
# Fused single-pass kernel: whole (B, C, HW) tile per grid step.
# ----------------------------------------------------------------------------
def _fused_kernel(x_ref, w1_ref, w2_ref, wc_ref, o_ref):
    # x_ref: (B, C, HW)  w1: (hid, C)  w2: (C, hid)  wc: (Co, C)  o: (B, Co, HW)
    w1 = w1_ref[...].astype(jnp.float32)
    w2 = w2_ref[...].astype(jnp.float32)
    wc = wc_ref[...].astype(jnp.float32)
    inv_hw = 1.0 / x_ref.shape[-1]
    for b in range(x_ref.shape[0]):            # static unroll over the batch block
        x = x_ref[b]                           # (C, HW) in the input dtype
        # AdaptiveAvg/MaxPool2d(1): lane reductions; mean accumulated in f32.
        avg = jnp.sum(x, axis=-1, keepdims=True, dtype=jnp.float32) * inv_hw
        mx = jnp.max(x, axis=-1, keepdims=True).astype(jnp.float32)
        pooled = jnp.concatenate([avg, mx], axis=-1)                      # (C, 2)
        # Shared MLP, both pooled branches in one tiny matmul.
        h = jnp.maximum(
            jnp.dot(w1, pooled, preferred_element_type=jnp.float32), 0.0)  # (hid, 2)
        pre = jnp.dot(w2, h, preferred_element_type=jnp.float32)           # (C, 2)
        att = jax.nn.sigmoid(jnp.sum(pre, axis=-1, keepdims=True))         # (C, 1)
        # Fold attention into the conv weight: Wc @ diag(att) @ x.
        wc_b = (wc * att.T).astype(x.dtype)                                # (Co, C)
        o_ref[b] = jnp.dot(
            wc_b, x, preferred_element_type=jnp.float32).astype(o_ref.dtype)


# ----------------------------------------------------------------------------
# Two-pass path for large HW: pass 1 pools + computes attention, pass 2 applies
# the folded conv weight tiled over HW.
# ----------------------------------------------------------------------------
def _pool_kernel(x_ref, w1_ref, w2_ref, att_ref, sum_sc, max_sc, *, inv_hw):
    s = pl.program_id(1)

    @pl.when(s == 0)
    def _init():
        sum_sc[...] = jnp.zeros_like(sum_sc)
        max_sc[...] = jnp.full_like(max_sc, -jnp.inf)

    x = x_ref[...]                                              # (B, C, hw_blk)
    sum_sc[...] += jnp.sum(x, axis=-1, keepdims=True, dtype=jnp.float32)
    max_sc[...] = jnp.maximum(
        max_sc[...], jnp.max(x, axis=-1, keepdims=True).astype(jnp.float32))

    @pl.when(s == pl.num_programs(1) - 1)
    def _finalize():
        w1 = w1_ref[...].astype(jnp.float32)
        w2 = w2_ref[...].astype(jnp.float32)
        for b in range(sum_sc.shape[0]):
            pooled = jnp.concatenate([sum_sc[b] * inv_hw, max_sc[b]], axis=-1)
            h = jnp.maximum(
                jnp.dot(w1, pooled, preferred_element_type=jnp.float32), 0.0)
            pre = jnp.dot(w2, h, preferred_element_type=jnp.float32)
            att_ref[b] = jax.nn.sigmoid(
                jnp.sum(pre, axis=-1, keepdims=True)).astype(att_ref.dtype)


def _apply_kernel(att_ref, x_ref, wc_ref, o_ref):
    wc = wc_ref[...].astype(jnp.float32)
    for b in range(x_ref.shape[0]):
        x = x_ref[b]                                            # (C, hw_blk)
        wc_b = (wc * att_ref[b].T).astype(x.dtype)              # (Co, C)
        o_ref[b] = jnp.dot(
            wc_b, x, preferred_element_type=jnp.float32).astype(o_ref.dtype)


# ----------------------------------------------------------------------------
# Block-size / VMEM heuristics.
# ----------------------------------------------------------------------------
def _pick_batch_block(n, per_batch_bytes, target_bytes=_TARGET_STEP_BYTES):
    """Largest divisor B of n with B * per_batch_bytes <= target, keeping at
    least 2 grid steps when n >= 2 (so both v7x TensorCores get work)."""
    best = 1
    for b in range(1, n + 1):
        if n % b:
            continue
        if n >= 2 and n // b < 2:
            continue
        if b * per_batch_bytes > target_bytes:
            continue
        best = b
    return best


def _vmem_limit_bytes(step_bytes):
    # Double-buffered blocks + headroom for weights/scratch; clamped to a range
    # safe on v5e/v6e (128 MiB physical) and v7x (64 MiB physical).
    return int(min(max(2 * step_bytes + (4 << 20), 32 << 20), 48 << 20))


def _channel_attention_hw_tiled(x_flat, w1, w2, wc, out_dtype, *,
                                batch_block, hw_block):
    N, C, HW = x_flat.shape
    hidden = w1.shape[0]
    Co = wc.shape[0]
    in_item = jnp.dtype(x_flat.dtype).itemsize
    out_item = jnp.dtype(out_dtype).itemsize

    if hw_block is None:
        hw_block = 128
        blk = 256
        while blk <= HW:
            if HW % blk == 0 and (C * in_item + Co * out_item) * blk <= _TARGET_STEP_BYTES:
                hw_block = blk
            blk *= 2
    assert HW % hw_block == 0 and hw_block % 128 == 0, (HW, hw_block)

    per_batch_step_bytes = (C * in_item + Co * out_item) * hw_block
    if batch_block is None:
        batch_block = _pick_batch_block(N, per_batch_step_bytes)
    assert N % batch_block == 0, (N, batch_block)
    B = batch_block
    grid = (N // B, HW // hw_block)
    step_bytes = B * per_batch_step_bytes

    # Pass 1: per-channel attention (N, C, 1) in f32 (running sum/max scratch).
    att = pl.pallas_call(
        functools.partial(_pool_kernel, inv_hw=1.0 / HW),
        out_shape=jax.ShapeDtypeStruct((N, C, 1), jnp.float32),
        grid_spec=pltpu.PrefetchScalarGridSpec(
            num_scalar_prefetch=0,
            grid=grid,
            in_specs=[
                pl.BlockSpec((B, C, hw_block), lambda i, s: (i, 0, s)),
                pl.BlockSpec((hidden, C), lambda i, s: (0, 0)),
                pl.BlockSpec((C, hidden), lambda i, s: (0, 0)),
            ],
            out_specs=pl.BlockSpec((B, C, 1), lambda i, s: (i, 0, 0)),
            scratch_shapes=[pltpu.VMEM((B, C, 1), jnp.float32),
                            pltpu.VMEM((B, C, 1), jnp.float32)],
        ),
        compiler_params=pltpu.CompilerParams(
            dimension_semantics=("parallel", "arbitrary"),
            vmem_limit_bytes=_vmem_limit_bytes(step_bytes)),
    )(x_flat, w1, w2)

    # Pass 2: out = (Wc * att^T) @ x, fully parallel over batch and HW tiles.
    return pl.pallas_call(
        _apply_kernel,
        out_shape=jax.ShapeDtypeStruct((N, Co, HW), out_dtype),
        grid_spec=pltpu.PrefetchScalarGridSpec(
            num_scalar_prefetch=0,
            grid=grid,
            in_specs=[
                pl.BlockSpec((B, C, 1), lambda i, s: (i, 0, 0)),
                pl.BlockSpec((B, C, hw_block), lambda i, s: (i, 0, s)),
                pl.BlockSpec((Co, C), lambda i, s: (0, 0)),
            ],
            out_specs=pl.BlockSpec((B, Co, hw_block), lambda i, s: (i, 0, s)),
        ),
        compiler_params=pltpu.CompilerParams(
            dimension_semantics=("parallel", "parallel"),
            vmem_limit_bytes=_vmem_limit_bytes(step_bytes)),
    )(att, x_flat, wc)


# ----------------------------------------------------------------------------
# Public wrapper.
# ----------------------------------------------------------------------------
def channel_attention(x_nchw, fc1_w, fc2_w, conv_w, *,
                      batch_block=None, hw_block=None):
    """x_nchw: (N, C, H, W); weights in PyTorch Conv2d layout (Cout, Cin, 1, 1)."""
    N, C, H, W = x_nchw.shape
    hidden = fc1_w.shape[0]
    Co = conv_w.shape[0]
    HW = H * W

    x_flat = x_nchw.reshape(N, C, HW)          # pure reshape, no transpose
    w1 = fc1_w[:, :, 0, 0]                     # (hidden, C)
    w2 = fc2_w[:, :, 0, 0]                     # (C, hidden)
    wc = conv_w[:, :, 0, 0]                    # (Co, C)

    out_dtype = x_nchw.dtype
    in_item = jnp.dtype(x_nchw.dtype).itemsize
    out_item = jnp.dtype(out_dtype).itemsize
    per_batch_bytes = (C * in_item + Co * out_item) * HW

    use_tiled = hw_block is not None or per_batch_bytes > _FUSED_MAX_STEP_BYTES
    if use_tiled and HW % 128 == 0:
        out_flat = _channel_attention_hw_tiled(
            x_flat, w1, w2, wc, out_dtype,
            batch_block=batch_block, hw_block=hw_block)
    else:
        # TODO(synk): very large H*W with HW % 128 != 0 falls back to the fused
        # path and may exceed VMEM; pad HW to a multiple of 128 upstream.
        if batch_block is None:
            batch_block = _pick_batch_block(N, per_batch_bytes)
        assert N % batch_block == 0, (N, batch_block)
        step_bytes = batch_block * per_batch_bytes
        out_flat = pl.pallas_call(
            _fused_kernel,
            out_shape=jax.ShapeDtypeStruct((N, Co, HW), out_dtype),
            grid_spec=pltpu.PrefetchScalarGridSpec(
                num_scalar_prefetch=0,
                grid=(N // batch_block,),
                in_specs=[
                    pl.BlockSpec((batch_block, C, HW), lambda i: (i, 0, 0)),
                    pl.BlockSpec((hidden, C), lambda i: (0, 0)),
                    pl.BlockSpec((C, hidden), lambda i: (0, 0)),
                    pl.BlockSpec((Co, C), lambda i: (0, 0)),
                ],
                out_specs=pl.BlockSpec((batch_block, Co, HW), lambda i: (i, 0, 0)),
            ),
            compiler_params=pltpu.CompilerParams(
                dimension_semantics=("parallel",),
                vmem_limit_bytes=_vmem_limit_bytes(step_bytes)),
        )(x_flat, w1, w2, wc)

    return out_flat.reshape(N, Co, H, W)


def channel_attention_ref(x, fc1_w, fc2_w, conv_w):
    """Pure-JAX reference mirroring the PyTorch forward (NCHW)."""
    w1 = fc1_w[:, :, 0, 0]   # (hidden, C)
    w2 = fc2_w[:, :, 0, 0]   # (C, hidden)
    wc = conv_w[:, :, 0, 0]  # (Co, C)
    avg = jnp.mean(x, axis=(2, 3))                       # (N, C)
    mx = jnp.max(x, axis=(2, 3))                         # (N, C)

    def mlp(p):
        return jnp.maximum(p @ w1.T, 0.0) @ w2.T         # (N, C)

    att = jax.nn.sigmoid(mlp(avg) + mlp(mx))             # (N, C)
    scaled = x * att[:, :, None, None]
    return jnp.einsum("oc,nchw->nohw", wc, scaled)


if __name__ == "__main__":
    key = jax.random.PRNGKey(0)
    N, C, H, W = 2, 24, 16, 16
    ratio = 8
    hidden = C // ratio          # 3
    Co = C // 3                  # 8

    kx, k1, k2, k3 = jax.random.split(key, 4)
    x = jax.random.normal(kx, (N, C, H, W), dtype=jnp.float32)
    fc1_w = jax.random.normal(k1, (hidden, C, 1, 1), dtype=jnp.float32) * 0.1
    fc2_w = jax.random.normal(k2, (C, hidden, 1, 1), dtype=jnp.float32) * 0.1
    conv_w = jax.random.normal(k3, (Co, C, 1, 1), dtype=jnp.float32) * 0.1

    ref = channel_attention_ref(x, fc1_w, fc2_w, conv_w)

    # Default path: fused kernel, grid over batch (2 steps of B=1 -> both v7x TCs busy).
    out = jax.block_until_ready(channel_attention(x, fc1_w, fc2_w, conv_w))
    assert out.shape == (N, Co, H, W), out.shape
    assert jnp.allclose(out, ref, atol=1e-4, rtol=1e-4), "fused path mismatch"

    # Overhead-amortized variant: whole batch folded into a single grid step.
    out_b2 = jax.block_until_ready(
        channel_attention(x, fc1_w, fc2_w, conv_w, batch_block=2))
    assert jnp.allclose(out_b2, ref, atol=1e-4, rtol=1e-4), "batched-block mismatch"

    # HW-tiled two-pass path (what real image sizes use), exercised at hw_block=128.
    out_tiled = jax.block_until_ready(
        channel_attention(x, fc1_w, fc2_w, conv_w, hw_block=128))
    assert jnp.allclose(out_tiled, ref, atol=1e-4, rtol=1e-4), "tiled path mismatch"

    print("KERNEL_OK")
</pallas_src>

<mosaic_0001>
module attributes {stable_mosaic.version = 11 : i64} {
  func.func @_fused_kernel(%arg0: i32, %arg1: memref<1x24x256xf32, #tpu.memory_space<vmem>>, %arg2: memref<3x24xf32, #tpu.memory_space<vmem>>, %arg3: memref<24x3xf32, #tpu.memory_space<vmem>>, %arg4: memref<8x24xf32, #tpu.memory_space<vmem>>, %arg5: memref<1x8x256xf32, #tpu.memory_space<vmem>>) attributes {dimension_semantics = [#tpu.dimension_semantics<parallel>], iteration_bounds = array<i64: 2>, scalar_prefetch = 0 : i64, scratch_operands = 0 : i64, tpu.core_type = #tpu.core_type<tc>, window_params = [{transform_indices = @transform_0, window_bounds = array<i64: 1, 24, 256>}, {pipeline_mode = #tpu.pipeline_mode<synchronous>, transform_indices = @transform_1, window_bounds = array<i64: 3, 24>}, {pipeline_mode = #tpu.pipeline_mode<synchronous>, transform_indices = @transform_2, window_bounds = array<i64: 24, 3>}, {pipeline_mode = #tpu.pipeline_mode<synchronous>, transform_indices = @transform_3, window_bounds = array<i64: 8, 24>}, {transform_indices = @transform_4, window_bounds = array<i64: 1, 8, 256>}]} {
    %c0 = arith.constant 0 : index
    %c0_0 = arith.constant 0 : index
    %0 = vector.load %arg2[%c0, %c0_0] : memref<3x24xf32, #tpu.memory_space<vmem>>, vector<3x24xf32>
    %c0_1 = arith.constant 0 : index
    %c0_2 = arith.constant 0 : index
    %1 = vector.load %arg3[%c0_1, %c0_2] : memref<24x3xf32, #tpu.memory_space<vmem>>, vector<24x3xf32>
    %c0_3 = arith.constant 0 : index
    %c0_4 = arith.constant 0 : index
    %2 = vector.load %arg4[%c0_3, %c0_4] : memref<8x24xf32, #tpu.memory_space<vmem>>, vector<8x24xf32>
    %c0_5 = arith.constant 0 : index
    %c0_6 = arith.constant 0 : index
    %c0_7 = arith.constant 0 : index
    %3 = vector.load %arg1[%c0_5, %c0_6, %c0_7] : memref<1x24x256xf32, #tpu.memory_space<vmem>>, vector<1x24x256xf32>
    %4 = vector.shape_cast %3 : vector<1x24x256xf32> to vector<24x256xf32>
    %cst = arith.constant dense<0.000000e+00> : vector<24xf32>
    %5 = vector.multi_reduction <add>, %4, %cst [1] : vector<24x256xf32> to vector<24xf32>
    %6 = vector.shape_cast %5 : vector<24xf32> to vector<24x1xf32>
    %cst_8 = arith.constant 3.906250e-03 : f32
    %7 = vector.broadcast %cst_8 : f32 to vector<24x1xf32>
    %8 = arith.mulf %6, %7 : vector<24x1xf32>
    %cst_9 = arith.constant dense<0xFF800000> : vector<24xf32>
    %9 = vector.multi_reduction <maximumf>, %4, %cst_9 [1] : vector<24x256xf32> to vector<24xf32>
    %10 = vector.shape_cast %9 : vector<24xf32> to vector<24x1xf32>
    %11 = tpu.concatenate %8, %10 in 1 : vector<24x1xf32>, vector<24x1xf32> -> vector<24x2xf32>
    %cst_10 = arith.constant dense<0.000000e+00> : vector<3x2xf32>
    %12 = tpu.matmul %0, %11, %cst_10 {dimension_numbers = #tpu.dot_dimension_numbers<[1], [0], [0], [1], [0, 0, 1, 1], [], []>} : vector<3x24xf32>, vector<24x2xf32>, vector<3x2xf32> -> vector<3x2xf32>
    %cst_11 = arith.constant 0.000000e+00 : f32
    %13 = vector.broadcast %cst_11 : f32 to vector<3x2xf32>
    %14 = arith.maximumf %12, %13 : vector<3x2xf32>
    %cst_12 = arith.constant dense<0.000000e+00> : vector<24x2xf32>
    %15 = tpu.matmul %1, %14, %cst_12 {dimension_numbers = #tpu.dot_dimension_numbers<[1], [0], [0], [1], [0, 0, 1, 1], [], []>} : vector<24x3xf32>, vector<3x2xf32>, vector<24x2xf32> -> vector<24x2xf32>
    %cst_13 = arith.constant dense<0.000000e+00> : vector<24xf32>
    %16 = vector.multi_reduction <add>, %15, %cst_13 [1] : vector<24x2xf32> to vector<24xf32>
    %17 = vector.shape_cast %16 : vector<24xf32> to vector<24x1xf32>
    %18 = arith.negf %17 : vector<24x1xf32>
    %19 = math.exp %18 : vector<24x1xf32>
    %cst_14 = arith.constant 1.000000e+00 : f32
    %20 = vector.broadcast %cst_14 : f32 to vector<24x1xf32>
    %21 = arith.addf %20, %19 : vector<24x1xf32>
    %22 = arith.divf %20, %21 : vector<24x1xf32>
    %23 = tpu.transpose %22, [1, 0] : vector<24x1xf32> -> vector<1x24xf32>
    %24 = vector.broadcast %23 : vector<1x24xf32> to vector<8x24xf32>
    %25 = arith.mulf %2, %24 : vector<8x24xf32>
    %cst_15 = arith.constant dense<0.000000e+00> : vector<8x256xf32>
    %26 = tpu.matmul %25, %4, %cst_15 {dimension_numbers = #tpu.dot_dimension_numbers<[1], [0], [0], [1], [0, 0, 1, 1], [], []>} : vector<8x24xf32>, vector<24x256xf32>, vector<8x256xf32> -> vector<8x256xf32>
    %c0_16 = arith.constant 0 : index
    %c0_17 = arith.constant 0 : index
    %c0_18 = arith.constant 0 : index
    %27 = vector.load %arg5[%c0_16, %c0_17, %c0_18] : memref<1x8x256xf32, #tpu.memory_space<vmem>>, vector<1x8x256xf32>
    %28 = vector.shape_cast %27 : vector<1x8x256xf32> to vector<8x256xf32>
    %29 = vector.shape_cast %26 : vector<8x256xf32> to vector<1x8x256xf32>
    tpu.vector_store %arg5[%c0_16, %c0_17, %c0_18], %29 {strides = array<i32>} : memref<1x8x256xf32, #tpu.memory_space<vmem>>, vector<1x8x256xf32>,
    return
  }
  func.func @transform_0(%arg0: i32) -> (i32, i32, i32) {
    %c0_i32 = arith.constant 0 : i32
    %c0_i32_0 = arith.constant 0 : i32
    %c0_i32_1 = arith.constant 0 : i32
    return %arg0, %c0_i32, %c0_i32_0 : i32, i32, i32
  }
  func.func @transform_1(%arg0: i32) -> (i32, i32) {
    %c0_i32 = arith.constant 0 : i32
    %c0_i32_0 = arith.constant 0 : i32
    %c0_i32_1 = arith.constant 0 : i32
    return %c0_i32, %c0_i32_0 : i32, i32
  }
  func.func @transform_2(%arg0: i32) -> (i32, i32) {
    %c0_i32 = arith.constant 0 : i32
    %c0_i32_0 = arith.constant 0 : i32
    %c0_i32_1 = arith.constant 0 : i32
    return %c0_i32, %c0_i32_0 : i32, i32
  }
  func.func @transform_3(%arg0: i32) -> (i32, i32) {
    %c0_i32 = arith.constant 0 : i32
    %c0_i32_0 = arith.constant 0 : i32
    %c0_i32_1 = arith.constant 0 : i32
    return %c0_i32, %c0_i32_0 : i32, i32
  }
  func.func @transform_4(%arg0: i32) -> (i32, i32, i32) {
    %c0_i32 = arith.constant 0 : i32
    %c0_i32_0 = arith.constant 0 : i32
    %c0_i32_1 = arith.constant 0 : i32
    return %arg0, %c0_i32, %c0_i32_0 : i32, i32, i32
  }
}

</mosaic_0001>

<llo_original>
// kernel: tpu_custom_call.1
$region0: #{tpu_custom_call.1}
  #allocation0 [shape = 'u32[]', space=smem, size = 0x4, offset = 0x4, fixed_abs, tag = 'smem constant byte address 0x4 - core index']
  #allocation1 [shape = 'u32[144,128]{1,0:T(1,128)}', space=vmem, size = 0x12000, scoped, tag = 'internal scratch']
  %s0 = inlined_call_operand.hbm [shape: f32[2,24,256], index: 0, kind: input, shape index: {}]
  %s1 = inlined_call_operand.vmem [shape: f32[3,24], index: 1, kind: input, shape index: {}]
  %s2 = inlined_call_operand.vmem [shape: f32[24,3], index: 2, kind: input, shape index: {}]
  %s3 = inlined_call_operand.vmem [shape: f32[8,24], index: 3, kind: input, shape index: {}]
  %s4 = inlined_call_operand.hbm [shape: f32[2,8,256], index: 4, kind: output, shape index: {}]
  %s5 = sld [smem:[#allocation0]]
  $region53: #{tpu_custom_call.1} parent=0
    _
  %s7 = ssub.s32 1, %s5
  %s8 = scalar_select 0, %s7, %s5
  $region1: #{tpu_custom_call.1} parent=0
    #allocation2 [shape = 'u8[49152]{0}', space=vmem, size = 0xc000, scoped, tag = 'input window, operand 0']
    #allocation3 [shape = 's32[2]{0}', space=sflag, size = 0x8, scoped, tag = 'scoped memory for tpu_custom_call.1']
    #allocation4 [shape = 's32[2]{0}', space=sflag, size = 0x8, scoped, tag = 'scoped memory for tpu_custom_call.1']
    #allocation5 [shape = 'u8[16384]{0}', space=vmem, size = 0x4000, scoped, tag = 'output window, operand 0']
    %9 = vsyncpa [#allocation3], 0
    %s10 = scalar_lea.sflag [#allocation3], 1
    %11 = vsyncpa %s10, 0
    %12 = vsyncpa [#allocation4], 0
    %s13 = scalar_lea.sflag [#allocation4], 1
    %14 = vsyncpa %s13, 0
    loop: start=0, step=1, limit=4
    $region2: #{tpu_custom_call.1} parent=1 // loop_pre_header
      _
    $region3: #{tpu_custom_call.1} parent=1 // loop_header
      %s16 = sphi 0, %s20
      %p17 = scmp.ge.s32.totalorder %s16, 4
      %s26 = sphi 0, %s28
      %s29 = sphi 0, %s26
      %s30 = sphi 0, %s29
      %s46 = sphi 0, %s30
      %s50 = sphi 0, %s50
      %s52 = sphi 0, %s50
      %s53 = sphi 0, %s52
      %s67 = sphi 0, %s53
      %s71 = sphi 0, %s71
      %s73 = sphi 0, %s71
      %s74 = sphi 0, %s73
      %s88 = sphi 0, %s74
      %s92 = sphi 0, %s92
      %s94 = sphi 0, %s92
      %s95 = sphi 0, %s94
      %s109 = sphi 0, %s95
      %s115 = sphi 0, %s117
      %s118 = sphi 0, %s115
      %s119 = sphi 0, %s118
      %s135 = sphi 0, %s119
    $region4: #{tpu_custom_call.1} parent=1 // loop_header_branch
      %19 = sbr.rel (%p17) target = $region8
    $region5: #{tpu_custom_call.1} parent=1 // loop_body
      %s21 = ssub.s32 %s16, 1
      %s22 = ssub.s32 %s16, 2
      %s23 = sadd.s32 %s16, 1
      %s24 = ssub.s32 %s16, %s23
      %p25 = scmp.eq.s32.totalorder %s24, 0
      %s27 = sadd.s32 %s26, 1
      %s28 = scalar_select %p25, %s26, %s27
      %p31 = pneg %p25
      %p32 = scmp.eq.s32.totalorder %s16, 1
      %p33 = por %p31, %p32
      %p34 = scmp.ne.s32.totalorder %s26, %s29
      %p35 = scmp.eq.s32.totalorder %s16, 0
      %p36 = por %p34, %p35
      %p37 = scmp.ne.s32.totalorder %s26, %s29
      %p38 = scmp.eq.s32.totalorder %s21, 1
      %p39 = por %p37, %p38
      %p40 = scmp.ne.s32.totalorder %s29, %s30
      %p41 = scmp.eq.s32.totalorder %s21, 0
      %p42 = por %p40, %p41
      %p43 = scmp.ne.s32.totalorder %s29, %s30
      %p44 = scmp.eq.s32.totalorder %s22, 1
      %p45 = por %p43, %p44
      %p47 = scmp.ne.s32.totalorder %s30, %s46
      %p48 = scmp.eq.s32.totalorder %s22, 0
      %p49 = por %p47, %p48
      %s51 = sadd.s32 %s50, 1
      %p54 = scmp.eq.s32.totalorder %s16, 1
      %p55 = scmp.ne.s32.totalorder %s50, %s52
      %p56 = scmp.eq.s32.totalorder %s16, 0
      %p57 = por %p55, %p56
      %p58 = scmp.ne.s32.totalorder %s50, %s52
      %p59 = scmp.eq.s32.totalorder %s21, 1
      %p60 = por %p58, %p59
      %p61 = scmp.ne.s32.totalorder %s52, %s53
      %p62 = scmp.eq.s32.totalorder %s21, 0
      %p63 = por %p61, %p62
      %p64 = scmp.ne.s32.totalorder %s52, %s53
      %p65 = scmp.eq.s32.totalorder %s22, 1
      %p66 = por %p64, %p65
      %p68 = scmp.ne.s32.totalorder %s53, %s67
      %p69 = scmp.eq.s32.totalorder %s22, 0
      %p70 = por %p68, %p69
      %s72 = sadd.s32 %s71, 1
      %p75 = scmp.eq.s32.totalorder %s16, 1
      %p76 = scmp.ne.s32.totalorder %s71, %s73
      %p77 = scmp.eq.s32.totalorder %s16, 0
      %p78 = por %p76, %p77
      %p79 = scmp.ne.s32.totalorder %s71, %s73
      %p80 = scmp.eq.s32.totalorder %s21, 1
      %p81 = por %p79, %p80
      %p82 = scmp.ne.s32.totalorder %s73, %s74
      %p83 = scmp.eq.s32.totalorder %s21, 0
      %p84 = por %p82, %p83
      %p85 = scmp.ne.s32.totalorder %s73, %s74
      %p86 = scmp.eq.s32.totalorder %s22, 1
      %p87 = por %p85, %p86
      %p89 = scmp.ne.s32.totalorder %s74, %s88
      %p90 = scmp.eq.s32.totalorder %s22, 0
      %p91 = por %p89, %p90
      %s93 = sadd.s32 %s92, 1
      %p96 = scmp.eq.s32.totalorder %s16, 1
      %p97 = scmp.ne.s32.totalorder %s92, %s94
      %p98 = scmp.eq.s32.totalorder %s16, 0
      %p99 = por %p97, %p98
      %p100 = scmp.ne.s32.totalorder %s92, %s94
      %p101 = scmp.eq.s32.totalorder %s21, 1
      %p102 = por %p100, %p101
      %p103 = scmp.ne.s32.totalorder %s94, %s95
      %p104 = scmp.eq.s32.totalorder %s21, 0
      %p105 = por %p103, %p104
      %p106 = scmp.ne.s32.totalorder %s94, %s95
      %p107 = scmp.eq.s32.totalorder %s22, 1
      %p108 = por %p106, %p107
      %p110 = scmp.ne.s32.totalorder %s95, %s109
      %p111 = scmp.eq.s32.totalorder %s22, 0
      %p112 = por %p110, %p111
      %s113 = ssub.s32 %s16, %s23
      %p114 = scmp.eq.s32.totalorder %s113, 0
      %s116 = sadd.s32 %s115, 1
      %s117 = scalar_select %p114, %s115, %s116
      %p120 = pneg %p114
      %p121 = scmp.eq.s32.totalorder %s16, 1
      %p122 = por %p120, %p121
      %p123 = scmp.ne.s32.totalorder %s115, %s118
      %p124 = scmp.eq.s32.totalorder %s16, 0
      %p125 = por %p123, %p124
      %p126 = scmp.ne.s32.totalorder %s115, %s118
      %p127 = scmp.eq.s32.totalorder %s21, 1
      %p128 = por %p126, %p127
      %p129 = scmp.ne.s32.totalorder %s118, %s119
      %p130 = scmp.eq.s32.totalorder %s21, 0
      %p131 = por %p129, %p130
      %p132 = scmp.ne.s32.totalorder %s118, %s119
      %p133 = scmp.eq.s32.totalorder %s22, 1
      %p134 = por %p132, %p133
      %p136 = scmp.ne.s32.totalorder %s119, %s135
      %p137 = scmp.eq.s32.totalorder %s22, 0
      %p138 = por %p136, %p137
      %p139 = scmp.le.s32.totalorder 1, %s16
      %p140 = scmp.lt.s32.totalorder %s16, 3
      %p141 = pnand %p139, %p140
      %p142 = pneg %p141
      // Predicated region
      $region9: #{tpu_custom_call.1} parent=5 // pred_check
        _
      $region10: #{tpu_custom_call.1} parent=5 // pred_check_branch
        %144 = sbr.rel (%p141) target = $region12
      $region11: #{tpu_custom_call.1} parent=5 // pred_region
        %s145 = ssub.s32 %s16, 1
        // Predicated region
        $region13: #{tpu_custom_call.1} parent=11 // pred_check
          %p146 = pneg %p63
        $region14: #{tpu_custom_call.1} parent=11 // pred_check_branch
          %148 = sbr.rel (%p146) target = $region16
        $region15: #{tpu_custom_call.1} parent=11 // pred_region
          _
        $region16: #{tpu_custom_call.1} parent=11 // pred_fallthru
          _
        // Predicated region
        $region17: #{tpu_custom_call.1} parent=11 // pred_check
          %p149 = pneg %p84
        $region18: #{tpu_custom_call.1} parent=11 // pred_check_branch
          %151 = sbr.rel (%p149) target = $region20
        $region19: #{tpu_custom_call.1} parent=11 // pred_region
          _
        $region20: #{tpu_custom_call.1} parent=11 // pred_fallthru
          _
        // Predicated region
        $region21: #{tpu_custom_call.1} parent=11 // pred_check
          %p152 = pneg %p105
        $region22: #{tpu_custom_call.1} parent=11 // pred_check_branch
          %154 = sbr.rel (%p152) target = $region24
        $region23: #{tpu_custom_call.1} parent=11 // pred_region
          _
        $region24: #{tpu_custom_call.1} parent=11 // pred_fallthru
          _
      $region12: #{tpu_custom_call.1} parent=5 // pred_fallthru
        _
      %p155 = scmp.lt.s32.totalorder %s16, 2
      // Predicated region
      $region25: #{tpu_custom_call.1} parent=5 // pred_check
        %p156 = pneg %p155
      $region26: #{tpu_custom_call.1} parent=5 // pred_check_branch
        %158 = sbr.rel (%p156) target = $region28
      $region27: #{tpu_custom_call.1} parent=5 // pred_region
        // Predicated region
        $region29: #{tpu_custom_call.1} parent=27 // pred_check
          %p159 = pneg %p36
        $region30: #{tpu_custom_call.1} parent=27 // pred_check_branch
          %161 = sbr.rel (%p159) target = $region32
        $region31: #{tpu_custom_call.1} parent=27 // pred_region
          %s162 = sand.u32 %s26, 1
          %s163 = scalar_lea.sflag [#allocation3], %s162
          %s164 = sand.u32 %s26, 1
          %s165 = smul.addr %s164, 48
          %s166 = scalar_lea.vmem [#allocation2], %s165
          %s168 = ssub.s32 768, 768
          %169 = vsyncadd %s163, %s168
          %s170 = smul.addr %s16, 6
          %s171 = smul.addr %s170, 128
          %s172 = scalar_lea.hbm %s0, %s171
          %s173 = sshll.u32 %s166, 4
          %s174 = int_to_ptr.vmem [resolvable:$true] %s173
          %179 = dma.hbm_to_vmem [thread:$0]  %s172, 768, %s174, %s163, 256, 256, 16
        $region32: #{tpu_custom_call.1} parent=27 // pred_fallthru
          _
      $region28: #{tpu_custom_call.1} parent=5 // pred_fallthru
        _
      %p180 = scmp.le.s32.totalorder 1, %s16
      %p181 = scmp.lt.s32.totalorder %s16, 3
      %p182 = pnand %p180, %p181
      %p183 = pneg %p182
      // Predicated region
      $region33: #{tpu_custom_call.1} parent=5 // pred_check
        _
      $region34: #{tpu_custom_call.1} parent=5 // pred_check_branch
        %185 = sbr.rel (%p182) target = $region36
      $region35: #{tpu_custom_call.1} parent=5 // pred_region
        %s186 = ssub.s32 %s16, 1
        %s187 = sand.u32 %s29, 1
        %s188 = scalar_lea.sflag [#allocation3], %s187
        %s189 = sand.u32 %s29, 1
        %s190 = smul.addr %s189, 48
        %s191 = scalar_lea.vmem [#allocation2], %s190
        // Predicated region
        $region37: #{tpu_custom_call.1} parent=35 // pred_check
          %p192 = pneg %p42
        $region38: #{tpu_custom_call.1} parent=35 // pred_check_branch
          %194 = sbr.rel (%p192) target = $region40
        $region39: #{tpu_custom_call.1} parent=35 // pred_region
          %195 = dma.done %s188, 768
        $region40: #{tpu_custom_call.1} parent=35 // pred_fallthru
          _
        %s196 = sand.u32 %s29, 1
        %s197 = scalar_lea.sflag [#allocation3], %s196
        %s198 = sand.u32 %s29, 1
        %s199 = smul.addr %s198, 48
        %s200 = scalar_lea.vmem [#allocation2], %s199
        %p201 = pneg %p42
        %p202 = pneg %p39
        %p203 = pneg %p63
        %p204 = pneg %p60
        %p205 = pneg %p84
        %p206 = pneg %p81
        %p207 = pneg %p105
        %p208 = pneg %p102
        %p209 = pneg %p131
        %p210 = pneg %p128
        %s211 = sand.u32 %s118, 1
        %s212 = scalar_lea.sflag [#allocation4], %s211
        %s213 = sand.u32 %s118, 1
        %s214 = smul.addr %s213, 16
        %s215 = scalar_lea.vmem [#allocation5], %s214
        %v216 = vld [vmem:[%s1] sm:$0x7]
        %v217 = vld [vmem:[%s2] sm:$0xff]
        %v218 = vld [vmem:[%s2 + $0x8] sm:$0xff]
        %v219 = vld [vmem:[%s2 + $0x10] sm:$0xff]
        %v220 = vld [vmem:[%s3] sm:$0xff]
        %v221 = vld [vmem:[%s191] sm:$0xff]
        %v222 = vld [vmem:[%s191 + $0x8] sm:$0xff]
        %v223 = vld [vmem:[%s191 + $0x10] sm:$0xff]
        %v224 = vld [vmem:[%s191 + $0x18] sm:$0xff]
        %v225 = vld [vmem:[%s191 + $0x20] sm:$0xff]
        %v226 = vld [vmem:[%s191 + $0x28] sm:$0xff]
        %v227 = vadd.f32 %v221, %v222
        %228 = vadd.xlane.f32.xlu0 %v227
        %v229 = vpop.xlane.xlu0 %228
        %v230 = vadd.f32 %v223, %v224
        %231 = vadd.xlane.f32.xlu0 %v230
        %v232 = vpop.xlane.xlu0 %231
        %v233 = vadd.f32 %v225, %v226
        %234 = vadd.xlane.f32.xlu0 %v233
        %v235 = vpop.xlane.xlu0 %234
        %v236 = vmul.f32 %v229, 0.00390625
        %v237 = vmul.f32 %v232, 0.00390625
        %v238 = vmul.f32 %v235, 0.00390625
        %v239 = vmax.f32 %v221, %v222
        %240 = vmax.xlane.f32.xlu0 %v239
        %v241 = vpop.xlane.xlu0 %240
        %v242 = vmax.f32 %v223, %v224
        %243 = vmax.xlane.f32.xlu0 %v242
        %v244 = vpop.xlane.xlu0 %243
        %v245 = vmax.f32 %v225, %v226
        %246 = vmax.xlane.f32.xlu0 %v245
        %v247 = vpop.xlane.xlu0 %246
        %vm248 = vcmask 7168
        %v249 = vsel %vm248, %v236, %v241
        %v250 = vsel %vm248, %v237, %v244
        %v251 = vsel %vm248, %v238, %v247
        %vm252 = vcmask 195584
        %v254 = vsel %vm252, %v216, 0
        %256 = vmatprep.subr.mxu0 0.0
        %257 = vmatpush1.msra.mxu0 %v249
        %258 = vmatprep.subr.mxu0 0.0
        %259 = vmatpush1.msra.mxu0 %v250
        %260 = vmatprep.subr.mxu0 0.0
        %261 = vmatpush1.msra.mxu0 %v251
        %262 = vmatprep.subr.mxu0 0.0
        %263 = vmatpush1.msra.mxu0 0.0
        %264 = vmatprep.subr.mxu0 0.0
        %265 = vmatpush1.msra.mxu0 0.0
        %266 = vmatprep.subr.mxu0 0.0
        %267 = vmatpush1.msra.mxu0 0.0
        %268 = vmatprep.subr.mxu0 0.0
        %269 = vmatpush1.msra.mxu0 0.0
        %270 = vmatprep.subr.mxu0 0.0
        %271 = vmatpush1.msra.mxu0 0.0
        %272 = vmatprep.subr.mxu0 0.0
        %273 = vmatpush1.msra.mxu0 0.0
        %274 = vmatprep.subr.mxu0 0.0
        %275 = vmatpush1.msra.mxu0 0.0
        %276 = vmatprep.subr.mxu0 0.0
        %277 = vmatpush1.msra.mxu0 0.0
        %278 = vmatprep.subr.mxu0 0.0
        %279 = vmatpush1.msra.mxu0 0.0
        %280 = vmatprep.subr.mxu0 0.0
        %281 = vmatpush1.msra.mxu0 0.0
        %282 = vmatprep.subr.mxu0 0.0
        %283 = vmatpush1.msra.mxu0 0.0
        %284 = vmatprep.subr.mxu0 0.0
        %285 = vmatpush1.msra.mxu0 0.0
        %286 = vmatprep.subr.mxu0 0.0
        %287 = vmatpush1.msra.mxu0 0.0
        %288 = vmatprep.subr.mxu0 0.0
        %289 = vmatpush1.msra.mxu0 0.0
        %290 = vmatprep.subr.mxu0 0.0
        %291 = vmatpush1.msra.mxu0 0.0
        %292 = vmatprep.subr.mxu0 0.0
        %293 = vmatpush1.msra.mxu0 0.0
        %294 = vmatprep.subr.mxu0 0.0
        %295 = vmatpush1.msra.mxu0 0.0
        %296 = vmatprep.subr.mxu0 0.0
        %297 = vmatpush1.msra.mxu0 0.0
        %298 = vmatprep.subr.mxu0 0.0
        %299 = vmatpush1.msra.mxu0 0.0
        %300 = vmatprep.subr.mxu0 0.0
        %301 = vmatpush1.msra.mxu0 0.0
        %302 = vmatprep.subr.mxu0 0.0
        %303 = vmatpush1.msra.mxu0 0.0
        %304 = vmatprep.subr.mxu0 0.0
        %305 = vmatpush1.msra.mxu0 0.0
        %306 = vmatprep.subr.mxu0 0.0
        %307 = vmatpush1.msra.mxu0 0.0
        %308 = vmatprep.subr.mxu0 0.0
        %309 = vmatpush1.msra.mxu0 0.0
        %310 = vmatprep.subr.mxu0 0.0
        %311 = vmatpush1.msra.mxu0 0.0
        %312 = vmatprep.subr.mxu0 0.0
        %313 = vmatpush1.msra.mxu0 0.0
        %314 = vmatprep.subr.mxu0 0.0
        %315 = vmatpush1.msra.mxu0 0.0
        %316 = vmatprep.subr.mxu0 0.0
        %317 = vmatpush1.msra.mxu0 0.0
        %318 = vmatprep.subr.mxu0 0.0
        %319 = vmatpush1.msra.mxu0 0.0
        %320 = vmatprep.mubr.f32.mxu0 0.0
        %321 = vmatmul.mubr.f32.gmra.mrb[0].mxu0 %v254
        %v322 = vpop.f32.mrb[0].mxu0
        %v323 = vadd.f32 0.0, %v322
        %v324 = vpop.f32.mrb[0].mxu0
        %325 = vdwg.mxu0
        %v326 = vmax.f32 %v323, 0.0
        %vm327 = vcmask 23552
        %v329 = vsel %vm327, %v217, 0
        %v332 = vsel %vm327, %v218, 0
        %v335 = vsel %vm327, %v219, 0
        %vm337 = vcmask 1042432
        %v339 = vsel %vm337, %v326, 0
        %341 = vmatprep.subr.mxu0 0.0
        %342 = vmatpush1.msra.mxu0 %v339
        %343 = vmatprep.subr.mxu0 0.0
        %344 = vmatpush1.msra.mxu0 0.0
        %345 = vmatprep.subr.mxu0 0.0
        %346 = vmatpush1.msra.mxu0 0.0
        %347 = vmatprep.subr.mxu0 0.0
        %348 = vmatpush1.msra.mxu0 0.0
        %349 = vmatprep.subr.mxu0 0.0
        %350 = vmatpush1.msra.mxu0 0.0
        %351 = vmatprep.subr.mxu0 0.0
        %352 = vmatpush1.msra.mxu0 0.0
        %353 = vmatprep.subr.mxu0 0.0
        %354 = vmatpush1.msra.mxu0 0.0
        %355 = vmatprep.subr.mxu0 0.0
        %356 = vmatpush1.msra.mxu0 0.0
        %357 = vmatprep.subr.mxu0 0.0
        %358 = vmatpush1.msra.mxu0 0.0
        %359 = vmatprep.subr.mxu0 0.0
        %360 = vmatpush1.msra.mxu0 0.0
        %361 = vmatprep.subr.mxu0 0.0
        %362 = vmatpush1.msra.mxu0 0.0
        %363 = vmatprep.subr.mxu0 0.0
        %364 = vmatpush1.msra.mxu0 0.0
        %365 = vmatprep.subr.mxu0 0.0
        %366 = vmatpush1.msra.mxu0 0.0
        %367 = vmatprep.subr.mxu0 0.0
        %368 = vmatpush1.msra.mxu0 0.0
        %369 = vmatprep.subr.mxu0 0.0
        %370 = vmatpush1.msra.mxu0 0.0
        %371 = vmatprep.subr.mxu0 0.0
        %372 = vmatpush1.msra.mxu0 0.0
        %373 = vmatprep.subr.mxu0 0.0
        %374 = vmatpush1.msra.mxu0 0.0
        %375 = vmatprep.subr.mxu0 0.0
        %376 = vmatpush1.msra.mxu0 0.0
        %377 = vmatprep.subr.mxu0 0.0
        %378 = vmatpush1.msra.mxu0 0.0
        %379 = vmatprep.subr.mxu0 0.0
        %380 = vmatpush1.msra.mxu0 0.0
        %381 = vmatprep.subr.mxu0 0.0
        %382 = vmatpush1.msra.mxu0 0.0
        %383 = vmatprep.subr.mxu0 0.0
        %384 = vmatpush1.msra.mxu0 0.0
        %385 = vmatprep.subr.mxu0 0.0
        %386 = vmatpush1.msra.mxu0 0.0
        %387 = vmatprep.subr.mxu0 0.0
        %388 = vmatpush1.msra.mxu0 0.0
        %389 = vmatprep.subr.mxu0 0.0
        %390 = vmatpush1.msra.mxu0 0.0
        %391 = vmatprep.subr.mxu0 0.0
        %392 = vmatpush1.msra.mxu0 0.0
        %393 = vmatprep.subr.mxu0 0.0
        %394 = vmatpush1.msra.mxu0 0.0
        %395 = vmatprep.subr.mxu0 0.0
        %396 = vmatpush1.msra.mxu0 0.0
        %397 = vmatprep.subr.mxu0 0.0
        %398 = vmatpush1.msra.mxu0 0.0
        %399 = vmatprep.subr.mxu0 0.0
        %400 = vmatpush1.msra.mxu0 0.0
        %401 = vmatprep.subr.mxu0 0.0
        %402 = vmatpush1.msra.mxu0 0.0
        %403 = vmatprep.subr.mxu0 0.0
        %404 = vmatpush1.msra.mxu0 0.0
        %405 = vmatprep.mubr.f32.mxu0 0.0
        %406 = vmatmul.mubr.f32.gmra.mrb[0].mxu0 %v329
        %v407 = vpop.f32.mrb[0].mxu0
        %v408 = vadd.f32 0.0, %v407
        %v409 = vpop.f32.mrb[0].mxu0
        %410 = vmatprep.mubr.f32.mxu0 0.0
        %411 = vmatmul.mubr.f32.gmra.mrb[0].mxu0 %v332
        %v412 = vpop.f32.mrb[0].mxu0
        %v413 = vadd.f32 0.0, %v412
        %v414 = vpop.f32.mrb[0].mxu0
        %415 = vmatprep.mubr.f32.mxu0 0.0
        %416 = vmatmul.mubr.f32.gmra.mrb[0].mxu0 %v335
        %v417 = vpop.f32.mrb[0].mxu0
        %v418 = vadd.f32 0.0, %v417
        %v419 = vpop.f32.mrb[0].mxu0
        %420 = vdwg.mxu0
        %vm421 = vcmask 15360
        %v422 = vsel %vm421, %v408, 0.0
        %423 = vadd.xlane.f32.xlu0 %v422
        %v424 = vpop.xlane.xlu0 %423
        %v425 = vsel %vm421, %v413, 0.0
        %426 = vadd.xlane.f32.xlu0 %v425
        %v427 = vpop.xlane.xlu0 %426
        %v428 = vsel %vm421, %v418, 0.0
        %429 = vadd.xlane.f32.xlu0 %v428
        %v430 = vpop.xlane.xlu0 %429
        %v431 = vxor.u32 %v424, 2147483648
        %v432 = vxor.u32 %v427, 2147483648
        %v433 = vxor.u32 %v430, 2147483648
        %v434 = vmul.f32 %v431, 1.442695
        %v435 = vpow.pop %v434
        %v436 = vmul.f32 %v432, 1.442695
        %v437 = vpow.pop %v436
        %v438 = vmul.f32 %v433, 1.442695
        %v439 = vpow.pop %v438
        %v440 = vadd.f32 %v435, 1.0
        %v441 = vadd.f32 %v437, 1.0
        %v442 = vadd.f32 %v439, 1.0
        %v443 = vrcp.pop %v440
        %v444 = vmul.f32 1.0, %v443
        %v445 = vrcp.pop %v441
        %v446 = vmul.f32 1.0, %v445
        %v447 = vrcp.pop %v442
        %v448 = vmul.f32 1.0, %v447
        %449 = vxpose.xlu0.b32.start [1/16] %v444, 128
        %450 = vxpose.xlu0.b32.cont [2/16] %v446, 128
        %451 = vxpose.xlu0.b32.cont [3/16] %v448, 128
        %452 = vxpose.xlu0.b32.cont [4/16] 0.0, 128
        %453 = vxpose.xlu0.b32.cont [5/16] 0.0, 128
        %454 = vxpose.xlu0.b32.cont [6/16] 0.0, 128
        %455 = vxpose.xlu0.b32.cont [7/16] 0.0, 128
        %456 = vxpose.xlu0.b32.cont [8/16] 0.0, 128
        %457 = vxpose.xlu0.b32.cont [9/16] 0.0, 128
        %458 = vxpose.xlu0.b32.cont [10/16] 0.0, 128
        %459 = vxpose.xlu0.b32.cont [11/16] 0.0, 128
        %460 = vxpose.xlu0.b32.cont [12/16] 0.0, 128
        %461 = vxpose.xlu0.b32.cont [13/16] 0.0, 128
        %462 = vxpose.xlu0.b32.cont [14/16] 0.0, 128
        %463 = vxpose.xlu0.b32.cont [15/16] 0.0, 128
        %464 = vxpose.xlu0.b32.end [16/16] 0.0, 128
        %v465 = vpop.trf.xlu0
        %v466 = vpop.trf.xlu0
        %v467 = vpop.trf.xlu0
        %v468 = vpop.trf.xlu0
        %v469 = vpop.trf.xlu0
        %v470 = vpop.trf.xlu0
        %v471 = vpop.trf.xlu0
        %v472 = vpop.trf.xlu0
        %v473 = vpop.trf.xlu0
        %v474 = vpop.trf.xlu0
        %v475 = vpop.trf.xlu0
        %v476 = vpop.trf.xlu0
        %v477 = vpop.trf.xlu0
        %v478 = vpop.trf.xlu0
        %v479 = vpop.trf.xlu0
        %v480 = vpop.trf.xlu0
        %v481 = vlaneseq
        %v482 = vshrl.u32 %v481, 7
        %v483 = vsub.s32 0, %v482
        %v484 = vrot.slane %v465, %v483
        %v485 = vmul.f32 %v220, %v484
        %v487 = vsel %vm252, %v485, 0
        %489 = vmatprep.subr.mxu0 %v222
        %490 = vmatpush1.msra.mxu0 %v221
        %491 = vmatprep.subr.mxu0 %v224
        %492 = vmatpush1.msra.mxu0 %v223
        %493 = vmatprep.subr.mxu0 %v226
        %494 = vmatpush1.msra.mxu0 %v225
        %495 = vmatprep.subr.mxu0 0.0
        %496 = vmatpush1.msra.mxu0 0.0
        %497 = vmatprep.subr.mxu0 0.0
        %498 = vmatpush1.msra.mxu0 0.0
        %499 = vmatprep.subr.mxu0 0.0
        %500 = vmatpush1.msra.mxu0 0.0
        %501 = vmatprep.subr.mxu0 0.0
        %502 = vmatpush1.msra.mxu0 0.0
        %503 = vmatprep.subr.mxu0 0.0
        %504 = vmatpush1.msra.mxu0 0.0
        %505 = vmatprep.subr.mxu0 0.0
        %506 = vmatpush1.msra.mxu0 0.0
        %507 = vmatprep.subr.mxu0 0.0
        %508 = vmatpush1.msra.mxu0 0.0
        %509 = vmatprep.subr.mxu0 0.0
        %510 = vmatpush1.msra.mxu0 0.0
        %511 = vmatprep.subr.mxu0 0.0
        %512 = vmatpush1.msra.mxu0 0.0
        %513 = vmatprep.subr.mxu0 0.0
        %514 = vmatpush1.msra.mxu0 0.0
        %515 = vmatprep.subr.mxu0 0.0
        %516 = vmatpush1.msra.mxu0 0.0
        %517 = vmatprep.subr.mxu0 0.0
        %518 = vmatpush1.msra.mxu0 0.0
        %519 = vmatprep.subr.mxu0 0.0
        %520 = vmatpush1.msra.mxu0 0.0
        %521 = vmatprep.subr.mxu0 0.0
        %522 = vmatpush1.msra.mxu0 0.0
        %523 = vmatprep.subr.mxu0 0.0
        %524 = vmatpush1.msra.mxu0 0.0
        %525 = vmatprep.subr.mxu0 0.0
        %526 = vmatpush1.msra.mxu0 0.0
        %527 = vmatprep.subr.mxu0 0.0
        %528 = vmatpush1.msra.mxu0 0.0
        %529 = vmatprep.subr.mxu0 0.0
        %530 = vmatpush1.msra.mxu0 0.0
        %531 = vmatprep.subr.mxu0 0.0
        %532 = vmatpush1.msra.mxu0 0.0
        %533 = vmatprep.subr.mxu0 0.0
        %534 = vmatpush1.msra.mxu0 0.0
        %535 = vmatprep.subr.mxu0 0.0
        %536 = vmatpush1.msra.mxu0 0.0
        %537 = vmatprep.subr.mxu0 0.0
        %538 = vmatpush1.msra.mxu0 0.0
        %539 = vmatprep.subr.mxu0 0.0
        %540 = vmatpush1.msra.mxu0 0.0
        %541 = vmatprep.subr.mxu0 0.0
        %542 = vmatpush1.msra.mxu0 0.0
        %543 = vmatprep.subr.mxu0 0.0
        %544 = vmatpush1.msra.mxu0 0.0
        %545 = vmatprep.subr.mxu0 0.0
        %546 = vmatpush1.msra.mxu0 0.0
        %547 = vmatprep.subr.mxu0 0.0
        %548 = vmatpush1.msra.mxu0 0.0
        %549 = vmatprep.subr.mxu0 0.0
        %550 = vmatpush1.msra.mxu0 0.0
        %551 = vmatprep.subr.mxu0 0.0
        %552 = vmatpush1.msra.mxu0 0.0
        %553 = vmatprep.mubr.f32.mxu0 0.0
        %554 = vmatmul.mubr.f32.gmra.mrb[0].mxu0 %v487
        %v555 = vpop.f32.mrb[0].mxu0
        %v556 = vadd.f32 0.0, %v555
        %v557 = vpop.f32.mrb[0].mxu0
        %v558 = vadd.f32 0.0, %v557
        %559 = vdwg.mxu0
        %560 = vst [vmem:[%s215] sm:$0xff] %v556
        %561 = vst [vmem:[%s215 + $0x8] sm:$0xff] %v558
        %s562 = sand.u32 %s118, 1
        %s563 = scalar_lea.sflag [#allocation4], %s562
        %s564 = sand.u32 %s118, 1
        %s565 = smul.addr %s564, 16
        %s566 = scalar_lea.vmem [#allocation5], %s565
        // Predicated region
        $region41: #{tpu_custom_call.1} parent=35 // pred_check
          %p567 = pneg %p128
        $region42: #{tpu_custom_call.1} parent=35 // pred_check_branch
          %569 = sbr.rel (%p567) target = $region44
        $region43: #{tpu_custom_call.1} parent=35 // pred_region
          %s571 = ssub.s32 256, 256
          %572 = vsyncadd %s563, %s571
          %s573 = smul.addr %s21, 2
          %s574 = smul.addr %s573, 128
          %s575 = scalar_lea.hbm %s4, %s574
          %s577 = sshll.u32 %s566, 4
          %s578 = int_to_ptr.vmem [resolvable:$true] %s577
          %580 = dma.vmem_to_hbm [thread:$0]  %s578, 256, %s575, %s563
        $region44: #{tpu_custom_call.1} parent=35 // pred_fallthru
          _
      $region36: #{tpu_custom_call.1} parent=5 // pred_fallthru
        _
      %p581 = scmp.le.s32.totalorder 2, %s16
      // Predicated region
      $region45: #{tpu_custom_call.1} parent=5 // pred_check
        %p582 = pneg %p581
      $region46: #{tpu_custom_call.1} parent=5 // pred_check_branch
        %584 = sbr.rel (%p582) target = $region48
      $region47: #{tpu_custom_call.1} parent=5 // pred_region
        %s585 = ssub.s32 %s16, 2
        // Predicated region
        $region49: #{tpu_custom_call.1} parent=47 // pred_check
          %p586 = pneg %p134
        $region50: #{tpu_custom_call.1} parent=47 // pred_check_branch
          %588 = sbr.rel (%p586) target = $region52
        $region51: #{tpu_custom_call.1} parent=47 // pred_region
          %s589 = sand.u32 %s119, 1
          %s590 = scalar_lea.sflag [#allocation4], %s589
          %s591 = sand.u32 %s119, 1
          %s592 = smul.addr %s591, 16
          %s593 = scalar_lea.vmem [#allocation5], %s592
          %594 = dma.done %s590, 256
        $region52: #{tpu_custom_call.1} parent=47 // pred_fallthru
          _
      $region48: #{tpu_custom_call.1} parent=5 // pred_fallthru
        _
    $region6: #{tpu_custom_call.1} parent=1 // loop_footer
      %s20 = sadd.s32 1, %s16
    $region7: #{tpu_custom_call.1} parent=1 // loop_footer_branch
      %15 = sbr.rel target = $region3
    $region8: #{tpu_custom_call.1} parent=1 // loop_exit
      _
    %595 = vsyncpa [#allocation3], 1
    %s596 = scalar_lea.sflag [#allocation3], 1
    %597 = vsyncpa %s596, 1
    %598 = vsyncpa [#allocation4], 1
    %s599 = scalar_lea.sflag [#allocation4], 1
    %600 = vsyncpa %s599, 1

</llo_original>
